<compile_context>
chip_gen: v7x
topology: tpu7x:2x2x1
jax: 0.10.0
libtpu: 0.0.40
codegen_flags: <defaults>
</compile_context>

<pallas_src>
import functools

import jax
import jax.numpy as jnp
from jax.experimental import pallas as pl
from jax.experimental.pallas import tpu as pltpu


# Double-buffered INPUT footprint cap (2 x (B, C, chunk) blocks). 24 MiB keeps
# the streaming pool pipelined on every generation once vmem_limit_bytes is
# raised (v5e/v6e: 128 MiB physical; v7x: 64 MiB physical).
_INPUT_VMEM_BUDGET = 24 * 1024 * 1024
_VMEM_LIMIT_BYTES = 40 * 1024 * 1024


def _spatial_chunk(hw_padded, bc, itemsize, budget):
    """Largest 128-aligned spatial chunk whose double-buffered (B, C, chunk)
    input block fits within `budget` bytes of VMEM."""
    per_lane = 2 * bc * itemsize          # factor 2 = double buffering
    chunk = budget // per_lane
    chunk -= chunk % 128
    return max(128, min(chunk, hw_padded))


# ----------------------------------------------------------------------------
# Fused CAM kernel
# ----------------------------------------------------------------------------
def _cam_kernel(x_ref, w1_ref, b1_ref, w2_ref, b2_ref, o_ref, acc_ref, *,
                inv_hw, n_cols):
    s = pl.program_id(0)

    @pl.when(s == 0)
    def _init():
        acc_ref[...] = jnp.zeros_like(acc_ref)

    # Partial global-average-pool for this spatial chunk: accumulate into a
    # (B, C, 128) lane-column accumulator with plain VPU adds (cast to f32 at
    # the add so bf16 inputs stream at native width).  The single cross-lane
    # reduce happens once in the epilogue instead of every grid step.
    if n_cols <= 32:   # small static trip count: keep it fully visible
        for j in range(n_cols):
            acc_ref[...] += x_ref[:, :, j * 128:(j + 1) * 128].astype(jnp.float32)
    else:
        def _fold(j, carry):
            off = pl.multiple_of(j * 128, 128)
            acc_ref[...] += x_ref[:, :, pl.ds(off, 128)].astype(jnp.float32)
            return carry
        jax.lax.fori_loop(0, n_cols, _fold, 0, unroll=4)

    @pl.when(s == pl.num_programs(0) - 1)
    def _finalize():
        pooled = jnp.sum(acc_ref[...], axis=2) * inv_hw              # (B, C)

        # conv1 (1x1, C -> C//4) + ReLU
        h = jnp.dot(pooled, w1_ref[...],
                    preferred_element_type=jnp.float32) + b1_ref[...]
        h = jnp.maximum(h, 0.0)

        # conv2 (1x1, C//4 -> C)
        y = jnp.dot(h, w2_ref[...],
                    preferred_element_type=jnp.float32) + b2_ref[...]

        # softmax over channels, per batch row
        m = jnp.max(y, axis=1, keepdims=True)
        e = jnp.exp(y - m)
        att = e / jnp.sum(e, axis=1, keepdims=True)

        # global (whole-tensor, cross-batch) min / max normalisation.
        # NOTE: like the PyTorch reference, a perfectly uniform softmax gives
        # gmax == 0 -> NaN; kept unguarded to preserve semantics.
        gmin = jnp.min(jnp.min(att, axis=1, keepdims=True), axis=0, keepdims=True)
        att = att - gmin
        gmax = jnp.max(jnp.max(att, axis=1, keepdims=True), axis=0, keepdims=True)
        o_ref[...] = att / gmax


def cam_forward(in_f, params, *,
                input_vmem_budget=_INPUT_VMEM_BUDGET,
                vmem_limit_bytes=_VMEM_LIMIT_BYTES):
    """in_f: (B, C, H, W) NCHW, any float dtype  ->  attention (B, C, 1, 1) f32."""
    B, C, H, W = in_f.shape
    C4 = params["w1_mat"].shape[1]
    HW = H * W

    # Flatten spatial onto the lane axis; keep NATIVE dtype (the f32 cast
    # happens at the in-kernel accumulate), so bf16 inputs stream half the bytes.
    x = in_f.reshape(B, C, HW)

    # VMEM-budget-aware, 128-aligned chunking of the only axis that can grow.
    hw128 = ((HW + 127) // 128) * 128
    chunk = _spatial_chunk(hw128, B * C, x.dtype.itemsize, input_vmem_budget)
    n_chunks = pl.cdiv(hw128, chunk)
    hw_pad = n_chunks * chunk
    if hw_pad != HW:
        # Zero-pad: padded zeros don't perturb the spatial SUM and we scale by
        # the true 1/HW, so the mean stays exact and every block is 128-aligned.
        x = jnp.pad(x, ((0, 0), (0, 0), (0, hw_pad - HW)))

    n_cols = chunk // 128
    kernel = functools.partial(_cam_kernel, inv_hw=1.0 / HW, n_cols=n_cols)

    # TODO(synk): for very large H*W on v7x, split the pooling across the two
    # TensorCores (grid=(2, n_chunks) with a "parallel" outer axis writing
    # partial (2, B, C) sums + a tiny epilogue); the single-core fused call is
    # kept here since the small/launch-bound case dominates and v5e/v6e have
    # one TC.
    att = pl.pallas_call(
        kernel,
        out_shape=jax.ShapeDtypeStruct((B, C), jnp.float32),
        grid=(n_chunks,),
        in_specs=[
            pl.BlockSpec((B, C, chunk), lambda s: (0, 0, s)),
            pl.BlockSpec((C, C4), lambda s: (0, 0)),
            pl.BlockSpec((1, C4), lambda s: (0, 0)),
            pl.BlockSpec((C4, C), lambda s: (0, 0)),
            pl.BlockSpec((1, C), lambda s: (0, 0)),
        ],
        out_specs=pl.BlockSpec((B, C), lambda s: (0, 0)),
        scratch_shapes=[pltpu.VMEM((B, C, 128), jnp.float32)],
        compiler_params=pltpu.CompilerParams(
            dimension_semantics=("arbitrary",),
            vmem_limit_bytes=vmem_limit_bytes),
    )(x, params["w1_mat"], params["b1_row"], params["w2_mat"], params["b2_row"])

    return att.reshape(B, C, 1, 1)


# ----------------------------------------------------------------------------
# Parameters (stored kernel-ready / pre-transposed) + pure-JAX reference
# ----------------------------------------------------------------------------
def init_params(key, channel):
    """Kernel-ready layout (transposed ONCE here, not per forward call):
       w1_mat == conv1.weight[:, :, 0, 0].T  -> (C,    C//4)
       w2_mat == conv2.weight[:, :, 0, 0].T  -> (C//4, C)
       b*_row == bias.reshape(1, -1)
    """
    c4 = channel // 4
    k1, k2, k3, k4 = jax.random.split(key, 4)
    s1 = 1.0 / jnp.sqrt(jnp.float32(channel))
    s2 = 1.0 / jnp.sqrt(jnp.float32(c4))
    return {
        "w1_mat": s1 * jax.random.normal(k1, (channel, c4), dtype=jnp.float32),
        "b1_row": s1 * jax.random.normal(k2, (1, c4), dtype=jnp.float32),
        "w2_mat": s2 * jax.random.normal(k3, (c4, channel), dtype=jnp.float32),
        "b2_row": s2 * jax.random.normal(k4, (1, channel), dtype=jnp.float32),
    }


def cam_reference(in_f, params):
    pooled = jnp.mean(in_f.astype(jnp.float32), axis=(2, 3))        # (B, C)
    h = jnp.maximum(pooled @ params["w1_mat"] + params["b1_row"], 0.0)
    y = h @ params["w2_mat"] + params["b2_row"]
    att = jax.nn.softmax(y, axis=1)
    att = att - jnp.min(att)
    att = att / jnp.max(att)
    B, C = att.shape
    return att.reshape(B, C, 1, 1)


# ----------------------------------------------------------------------------
if __name__ == "__main__":
    key = jax.random.PRNGKey(0)
    kp, kx = jax.random.split(key)

    B, C, H, W = 2, 64, 16, 16
    params = init_params(kp, C)
    in_f = jax.random.normal(kx, (B, C, H, W), dtype=jnp.float32)

    fwd = jax.jit(cam_forward)

    # f32 activations
    att = jax.block_until_ready(fwd(in_f, params))
    ref = cam_reference(in_f, params)
    assert att.shape == (B, C, 1, 1)
    assert bool(jnp.all(jnp.isfinite(att)))
    assert bool(jnp.allclose(att, ref, rtol=1e-4, atol=1e-5))

    # bf16 activations stream at native width; cast to f32 at the accumulate.
    in_bf16 = in_f.astype(jnp.bfloat16)
    att_bf16 = jax.block_until_ready(fwd(in_bf16, params))
    ref_bf16 = cam_reference(in_bf16, params)
    assert bool(jnp.all(jnp.isfinite(att_bf16)))
    assert bool(jnp.allclose(att_bf16, ref_bf16, rtol=2e-3, atol=2e-3))

    print("KERNEL_OK")
</pallas_src>

<mosaic_0001>
module attributes {stable_mosaic.version = 11 : i64} {
  func.func @_cam_kernel(%arg0: i32, %arg1: memref<2x64x256xf32, #tpu.memory_space<vmem>>, %arg2: memref<64x16xf32, #tpu.memory_space<vmem>>, %arg3: memref<1x16xf32, #tpu.memory_space<vmem>>, %arg4: memref<16x64xf32, #tpu.memory_space<vmem>>, %arg5: memref<1x64xf32, #tpu.memory_space<vmem>>, %arg6: memref<2x64xf32, #tpu.memory_space<vmem>>, %arg7: memref<2x64x128xf32, #tpu.memory_space<vmem>>) attributes {dimension_semantics = [#tpu.dimension_semantics<arbitrary>], iteration_bounds = array<i64: 1>, scalar_prefetch = 0 : i64, scratch_operands = 1 : i64, tpu.core_type = #tpu.core_type<tc>, window_params = [{transform_indices = @transform_0, window_bounds = array<i64: 2, 64, 256>}, {pipeline_mode = #tpu.pipeline_mode<synchronous>, transform_indices = @transform_1, window_bounds = array<i64: 64, 16>}, {pipeline_mode = #tpu.pipeline_mode<synchronous>, transform_indices = @transform_2, window_bounds = array<i64: 1, 16>}, {pipeline_mode = #tpu.pipeline_mode<synchronous>, transform_indices = @transform_3, window_bounds = array<i64: 16, 64>}, {pipeline_mode = #tpu.pipeline_mode<synchronous>, transform_indices = @transform_4, window_bounds = array<i64: 1, 64>}, {pipeline_mode = #tpu.pipeline_mode<synchronous>, transform_indices = @transform_5, window_bounds = array<i64: 2, 64>}]} {
    %c0_i32 = arith.constant 0 : i32
    %0 = arith.cmpi eq, %arg0, %c0_i32 : i32
    %1 = arith.extui %0 : i1 to i32
    %c0_i32_0 = arith.constant 0 : i32
    %2 = arith.cmpi ne, %1, %c0_i32_0 : i32
    scf.if %2 {
      %cst = arith.constant 0.000000e+00 : f32
      %14 = vector.broadcast %cst : f32 to vector<2x64x128xf32>
      %c0_19 = arith.constant 0 : index
      %c0_20 = arith.constant 0 : index
      %c0_21 = arith.constant 0 : index
      %15 = vector.load %arg7[%c0_19, %c0_20, %c0_21] : memref<2x64x128xf32, #tpu.memory_space<vmem>>, vector<2x64x128xf32>
      tpu.vector_store %arg7[%c0_19, %c0_20, %c0_21], %14 {strides = array<i32>} : memref<2x64x128xf32, #tpu.memory_space<vmem>>, vector<2x64x128xf32>,
    } else {
    }
    %c0 = arith.constant 0 : index
    %c0_1 = arith.constant 0 : index
    %c0_2 = arith.constant 0 : index
    %3 = vector.load %arg7[%c0, %c0_1, %c0_2] : memref<2x64x128xf32, #tpu.memory_space<vmem>>, vector<2x64x128xf32>
    %c0_3 = arith.constant 0 : index
    %c0_4 = arith.constant 0 : index
    %c0_5 = arith.constant 0 : index
    %4 = vector.load %arg1[%c0_3, %c0_4, %c0_5] : memref<2x64x256xf32, #tpu.memory_space<vmem>>, vector<2x64x128xf32>
    %5 = arith.addf %3, %4 : vector<2x64x128xf32>
    %c0_6 = arith.constant 0 : index
    %c0_7 = arith.constant 0 : index
    %c0_8 = arith.constant 0 : index
    %6 = vector.load %arg7[%c0_6, %c0_7, %c0_8] : memref<2x64x128xf32, #tpu.memory_space<vmem>>, vector<2x64x128xf32>
    tpu.vector_store %arg7[%c0_6, %c0_7, %c0_8], %5 {strides = array<i32>} : memref<2x64x128xf32, #tpu.memory_space<vmem>>, vector<2x64x128xf32>,
    %c0_9 = arith.constant 0 : index
    %c0_10 = arith.constant 0 : index
    %c0_11 = arith.constant 0 : index
    %7 = vector.load %arg7[%c0_9, %c0_10, %c0_11] : memref<2x64x128xf32, #tpu.memory_space<vmem>>, vector<2x64x128xf32>
    %c0_12 = arith.constant 0 : index
    %c0_13 = arith.constant 0 : index
    %c128 = arith.constant 128 : index
    %8 = vector.load %arg1[%c0_12, %c0_13, %c128] : memref<2x64x256xf32, #tpu.memory_space<vmem>>, vector<2x64x128xf32>
    %9 = arith.addf %7, %8 : vector<2x64x128xf32>
    %c0_14 = arith.constant 0 : index
    %c0_15 = arith.constant 0 : index
    %c0_16 = arith.constant 0 : index
    %10 = vector.load %arg7[%c0_14, %c0_15, %c0_16] : memref<2x64x128xf32, #tpu.memory_space<vmem>>, vector<2x64x128xf32>
    tpu.vector_store %arg7[%c0_14, %c0_15, %c0_16], %9 {strides = array<i32>} : memref<2x64x128xf32, #tpu.memory_space<vmem>>, vector<2x64x128xf32>,
    %c0_i32_17 = arith.constant 0 : i32
    %11 = arith.cmpi eq, %arg0, %c0_i32_17 : i32
    %12 = arith.extui %11 : i1 to i32
    %c0_i32_18 = arith.constant 0 : i32
    %13 = arith.cmpi ne, %12, %c0_i32_18 : i32
    scf.if %13 {
      %c0_19 = arith.constant 0 : index
      %c0_20 = arith.constant 0 : index
      %c0_21 = arith.constant 0 : index
      %14 = vector.load %arg7[%c0_19, %c0_20, %c0_21] : memref<2x64x128xf32, #tpu.memory_space<vmem>>, vector<2x64x128xf32>
      %cst = arith.constant dense<0.000000e+00> : vector<2x64xf32>
      %15 = vector.multi_reduction <add>, %14, %cst [2] : vector<2x64x128xf32> to vector<2x64xf32>
      %cst_22 = arith.constant 3.906250e-03 : f32
      %16 = vector.broadcast %cst_22 : f32 to vector<2x64xf32>
      %17 = arith.mulf %15, %16 : vector<2x64xf32>
      %c0_23 = arith.constant 0 : index
      %c0_24 = arith.constant 0 : index
      %18 = vector.load %arg2[%c0_23, %c0_24] : memref<64x16xf32, #tpu.memory_space<vmem>>, vector<64x16xf32>
      %cst_25 = arith.constant dense<0.000000e+00> : vector<2x16xf32>
      %19 = tpu.matmul %17, %18, %cst_25 {dimension_numbers = #tpu.dot_dimension_numbers<[1], [0], [0], [1], [0, 0, 1, 1], [], []>} : vector<2x64xf32>, vector<64x16xf32>, vector<2x16xf32> -> vector<2x16xf32>
      %c0_26 = arith.constant 0 : index
      %c0_27 = arith.constant 0 : index
      %20 = vector.load %arg3[%c0_26, %c0_27] : memref<1x16xf32, #tpu.memory_space<vmem>>, vector<1x16xf32>
      %21 = vector.broadcast %20 : vector<1x16xf32> to vector<2x16xf32>
      %22 = arith.addf %19, %21 : vector<2x16xf32>
      %cst_28 = arith.constant 0.000000e+00 : f32
      %23 = vector.broadcast %cst_28 : f32 to vector<2x16xf32>
      %24 = arith.maximumf %22, %23 : vector<2x16xf32>
      %c0_29 = arith.constant 0 : index
      %c0_30 = arith.constant 0 : index
      %25 = vector.load %arg4[%c0_29, %c0_30] : memref<16x64xf32, #tpu.memory_space<vmem>>, vector<16x64xf32>
      %cst_31 = arith.constant dense<0.000000e+00> : vector<2x64xf32>
      %26 = tpu.matmul %24, %25, %cst_31 {dimension_numbers = #tpu.dot_dimension_numbers<[1], [0], [0], [1], [0, 0, 1, 1], [], []>} : vector<2x16xf32>, vector<16x64xf32>, vector<2x64xf32> -> vector<2x64xf32>
      %c0_32 = arith.constant 0 : index
      %c0_33 = arith.constant 0 : index
      %27 = vector.load %arg5[%c0_32, %c0_33] : memref<1x64xf32, #tpu.memory_space<vmem>>, vector<1x64xf32>
      %28 = vector.broadcast %27 : vector<1x64xf32> to vector<2x64xf32>
      %29 = arith.addf %26, %28 : vector<2x64xf32>
      %cst_34 = arith.constant dense<0xFF800000> : vector<2xf32>
      %30 = vector.multi_reduction <maximumf>, %29, %cst_34 [1] : vector<2x64xf32> to vector<2xf32>
      %31 = vector.shape_cast %30 : vector<2xf32> to vector<2x1xf32>
      %32 = vector.broadcast %31 : vector<2x1xf32> to vector<2x64xf32>
      %33 = arith.subf %29, %32 : vector<2x64xf32>
      %34 = math.exp %33 : vector<2x64xf32>
      %cst_35 = arith.constant dense<0.000000e+00> : vector<2xf32>
      %35 = vector.multi_reduction <add>, %34, %cst_35 [1] : vector<2x64xf32> to vector<2xf32>
      %36 = vector.shape_cast %35 : vector<2xf32> to vector<2x1xf32>
      %37 = vector.broadcast %36 : vector<2x1xf32> to vector<2x64xf32>
      %38 = arith.divf %34, %37 : vector<2x64xf32>
      %cst_36 = arith.constant dense<0x7F800000> : vector<2xf32>
      %39 = vector.multi_reduction <minimumf>, %38, %cst_36 [1] : vector<2x64xf32> to vector<2xf32>
      %40 = vector.shape_cast %39 : vector<2xf32> to vector<2x1xf32>
      %cst_37 = arith.constant dense<0x7F800000> : vector<1xf32>
      %41 = vector.multi_reduction <minimumf>, %40, %cst_37 [0] : vector<2x1xf32> to vector<1xf32>
      %42 = vector.shape_cast %41 : vector<1xf32> to vector<1x1xf32>
      %43 = vector.broadcast %42 : vector<1x1xf32> to vector<2x64xf32>
      %44 = arith.subf %38, %43 : vector<2x64xf32>
      %cst_38 = arith.constant dense<0xFF800000> : vector<2xf32>
      %45 = vector.multi_reduction <maximumf>, %44, %cst_38 [1] : vector<2x64xf32> to vector<2xf32>
      %46 = vector.shape_cast %45 : vector<2xf32> to vector<2x1xf32>
      %cst_39 = arith.constant dense<0xFF800000> : vector<1xf32>
      %47 = vector.multi_reduction <maximumf>, %46, %cst_39 [0] : vector<2x1xf32> to vector<1xf32>
      %48 = vector.shape_cast %47 : vector<1xf32> to vector<1x1xf32>
      %49 = vector.broadcast %48 : vector<1x1xf32> to vector<2x64xf32>
      %50 = arith.divf %44, %49 : vector<2x64xf32>
      %c0_40 = arith.constant 0 : index
      %c0_41 = arith.constant 0 : index
      %51 = vector.load %arg6[%c0_40, %c0_41] : memref<2x64xf32, #tpu.memory_space<vmem>>, vector<2x64xf32>
      tpu.vector_store %arg6[%c0_40, %c0_41], %50 {strides = array<i32>} : memref<2x64xf32, #tpu.memory_space<vmem>>, vector<2x64xf32>,
    } else {
    }
    return
  }
  func.func @transform_0(%arg0: i32) -> (i32, i32, i32) {
    %c0_i32 = arith.constant 0 : i32
    %c0_i32_0 = arith.constant 0 : i32
    %c0_i32_1 = arith.constant 0 : i32
    return %c0_i32, %c0_i32_0, %arg0 : i32, i32, i32
  }
  func.func @transform_1(%arg0: i32) -> (i32, i32) {
    %c0_i32 = arith.constant 0 : i32
    %c0_i32_0 = arith.constant 0 : i32
    %c0_i32_1 = arith.constant 0 : i32
    return %c0_i32, %c0_i32_0 : i32, i32
  }
  func.func @transform_2(%arg0: i32) -> (i32, i32) {
    %c0_i32 = arith.constant 0 : i32
    %c0_i32_0 = arith.constant 0 : i32
    %c0_i32_1 = arith.constant 0 : i32
    return %c0_i32, %c0_i32_0 : i32, i32
  }
  func.func @transform_3(%arg0: i32) -> (i32, i32) {
    %c0_i32 = arith.constant 0 : i32
    %c0_i32_0 = arith.constant 0 : i32
    %c0_i32_1 = arith.constant 0 : i32
    return %c0_i32, %c0_i32_0 : i32, i32
  }
  func.func @transform_4(%arg0: i32) -> (i32, i32) {
    %c0_i32 = arith.constant 0 : i32
    %c0_i32_0 = arith.constant 0 : i32
    %c0_i32_1 = arith.constant 0 : i32
    return %c0_i32, %c0_i32_0 : i32, i32
  }
  func.func @transform_5(%arg0: i32) -> (i32, i32) {
    %c0_i32 = arith.constant 0 : i32
    %c0_i32_0 = arith.constant 0 : i32
    %c0_i32_1 = arith.constant 0 : i32
    return %c0_i32, %c0_i32_0 : i32, i32
  }
}

</mosaic_0001>

<llo_original>
// kernel: cam_forward.1
$region0: #{cam_forward.1}
  #allocation0 [shape = 'u32[]', space=smem, size = 0x4, offset = 0x4, fixed_abs, tag = 'smem constant byte address 0x4 - core index']
  #allocation1 [shape = 'u32[144,128]{1,0:T(1,128)}', space=vmem, size = 0x12000, scoped, tag = 'internal scratch']
  #allocation2 [shape = 'f32[2,64,128]{2,1,0:T(8,128)}', space=vmem, size = 0x10000, scoped, tag = 'scratch operand']
  %s0 = inlined_call_operand.vmem [shape: f32[2,64,256], index: 0, kind: input, shape index: {}]
  %s1 = inlined_call_operand.vmem [shape: f32[64,16], index: 1, kind: input, shape index: {}]
  %s2 = inlined_call_operand.vmem [shape: f32[1,16], index: 2, kind: input, shape index: {}]
  %s3 = inlined_call_operand.vmem [shape: f32[16,64], index: 3, kind: input, shape index: {}]
  %s4 = inlined_call_operand.vmem [shape: f32[1,64], index: 4, kind: input, shape index: {}]
  %s5 = inlined_call_operand.hbm [shape: f32[2,64], index: 5, kind: output, shape index: {}]
  %s6 = sld [smem:[#allocation0]]
  $region38: #{cam_forward.1} parent=0
    _
  %s8 = ssub.s32 1, %s6
  %s9 = scalar_select 0, %s8, %s6
  $region1: #{cam_forward.1} parent=0
    #allocation3 [shape = 'u8[1024]{0}', space=vmem, size = 0x400, scoped, tag = 'output window, operand 0, single buffered']
    #allocation4 [shape = 's32[1]{0}', space=sflag, size = 0x4, scoped, tag = 'scoped memory for cam_forward.1']
    %10 = vsyncpa [#allocation4], 0
    // Predicated region
    $region2: #{cam_forward.1} parent=1 // pred_check
      _
    $region3: #{cam_forward.1} parent=1 // pred_check_branch
      %12 = sbr.rel (0) target = $region5
    $region4: #{cam_forward.1} parent=1 // pred_region
      _
    $region5: #{cam_forward.1} parent=1 // pred_fallthru
      _
    // Predicated region
    $region6: #{cam_forward.1} parent=1 // pred_check
      _
    $region7: #{cam_forward.1} parent=1 // pred_check_branch
      %14 = sbr.rel (0) target = $region9
    $region8: #{cam_forward.1} parent=1 // pred_region
      _
    $region9: #{cam_forward.1} parent=1 // pred_fallthru
      _
    // Predicated region
    $region10: #{cam_forward.1} parent=1 // pred_check
      _
    $region11: #{cam_forward.1} parent=1 // pred_check_branch
      %16 = sbr.rel (0) target = $region13
    $region12: #{cam_forward.1} parent=1 // pred_region
      _
    $region13: #{cam_forward.1} parent=1 // pred_fallthru
      _
    // Predicated region
    $region14: #{cam_forward.1} parent=1 // pred_check
      _
    $region15: #{cam_forward.1} parent=1 // pred_check_branch
      %18 = sbr.rel (0) target = $region17
    $region16: #{cam_forward.1} parent=1 // pred_region
      _
    $region17: #{cam_forward.1} parent=1 // pred_fallthru
      _
    // Predicated region
    $region18: #{cam_forward.1} parent=1 // pred_check
      _
    $region19: #{cam_forward.1} parent=1 // pred_check_branch
      %20 = sbr.rel (0) target = $region21
    $region20: #{cam_forward.1} parent=1 // pred_region
      _
    $region21: #{cam_forward.1} parent=1 // pred_fallthru
      _
    %p21 = scmp.eq.s32.totalorder 0, 0
    // Predicated region
    $region22: #{cam_forward.1} parent=1 // pred_check
      %p22 = pneg %p21
    $region23: #{cam_forward.1} parent=1 // pred_check_branch
      %24 = sbr.rel (%p22) target = $region25
    $region24: #{cam_forward.1} parent=1 // pred_region
      %25 = vst [vmem:[#allocation2] sm:$0xff] 0.0
      %26 = vst [vmem:[#allocation2 + $0x8] sm:$0xff] 0.0
      %27 = vst [vmem:[#allocation2 + $0x10] sm:$0xff] 0.0
      %28 = vst [vmem:[#allocation2 + $0x18] sm:$0xff] 0.0
      %29 = vst [vmem:[#allocation2 + $0x20] sm:$0xff] 0.0
      %30 = vst [vmem:[#allocation2 + $0x28] sm:$0xff] 0.0
      %31 = vst [vmem:[#allocation2 + $0x30] sm:$0xff] 0.0
      %32 = vst [vmem:[#allocation2 + $0x38] sm:$0xff] 0.0
      %33 = vst [vmem:[#allocation2 + $0x40] sm:$0xff] 0.0
      %34 = vst [vmem:[#allocation2 + $0x48] sm:$0xff] 0.0
      %35 = vst [vmem:[#allocation2 + $0x50] sm:$0xff] 0.0
      %36 = vst [vmem:[#allocation2 + $0x58] sm:$0xff] 0.0
      %37 = vst [vmem:[#allocation2 + $0x60] sm:$0xff] 0.0
      %38 = vst [vmem:[#allocation2 + $0x68] sm:$0xff] 0.0
      %39 = vst [vmem:[#allocation2 + $0x70] sm:$0xff] 0.0
      %40 = vst [vmem:[#allocation2 + $0x78] sm:$0xff] 0.0
    $region25: #{cam_forward.1} parent=1 // pred_fallthru
      _
    %v41 = vld [vmem:[#allocation2] sm:$0xff]
    %v42 = vld [vmem:[#allocation2 + $0x8] sm:$0xff]
    %v43 = vld [vmem:[#allocation2 + $0x10] sm:$0xff]
    %v44 = vld [vmem:[#allocation2 + $0x18] sm:$0xff]
    %v45 = vld [vmem:[#allocation2 + $0x20] sm:$0xff]
    %v46 = vld [vmem:[#allocation2 + $0x28] sm:$0xff]
    %v47 = vld [vmem:[#allocation2 + $0x30] sm:$0xff]
    %v48 = vld [vmem:[#allocation2 + $0x38] sm:$0xff]
    %v49 = vld [vmem:[#allocation2 + $0x40] sm:$0xff]
    %v50 = vld [vmem:[#allocation2 + $0x48] sm:$0xff]
    %v51 = vld [vmem:[#allocation2 + $0x50] sm:$0xff]
    %v52 = vld [vmem:[#allocation2 + $0x58] sm:$0xff]
    %v53 = vld [vmem:[#allocation2 + $0x60] sm:$0xff]
    %v54 = vld [vmem:[#allocation2 + $0x68] sm:$0xff]
    %v55 = vld [vmem:[#allocation2 + $0x70] sm:$0xff]
    %v56 = vld [vmem:[#allocation2 + $0x78] sm:$0xff]
    %v57 = vld [vmem:[%s0] sm:$0xff]
    %v58 = vld [vmem:[%s0 + $0x10] sm:$0xff]
    %v59 = vld [vmem:[%s0 + $0x20] sm:$0xff]
    %v60 = vld [vmem:[%s0 + $0x30] sm:$0xff]
    %v61 = vld [vmem:[%s0 + $0x40] sm:$0xff]
    %v62 = vld [vmem:[%s0 + $0x50] sm:$0xff]
    %v63 = vld [vmem:[%s0 + $0x60] sm:$0xff]
    %v64 = vld [vmem:[%s0 + $0x70] sm:$0xff]
    %v65 = vld [vmem:[%s0 + $0x80] sm:$0xff]
    %v66 = vld [vmem:[%s0 + $0x90] sm:$0xff]
    %v67 = vld [vmem:[%s0 + $0xa0] sm:$0xff]
    %v68 = vld [vmem:[%s0 + $0xb0] sm:$0xff]
    %v69 = vld [vmem:[%s0 + $0xc0] sm:$0xff]
    %v70 = vld [vmem:[%s0 + $0xd0] sm:$0xff]
    %v71 = vld [vmem:[%s0 + $0xe0] sm:$0xff]
    %v72 = vld [vmem:[%s0 + $0xf0] sm:$0xff]
    %v73 = vadd.f32 %v41, %v57
    %v74 = vadd.f32 %v42, %v58
    %v75 = vadd.f32 %v43, %v59
    %v76 = vadd.f32 %v44, %v60
    %v77 = vadd.f32 %v45, %v61
    %v78 = vadd.f32 %v46, %v62
    %v79 = vadd.f32 %v47, %v63
    %v80 = vadd.f32 %v48, %v64
    %v81 = vadd.f32 %v49, %v65
    %v82 = vadd.f32 %v50, %v66
    %v83 = vadd.f32 %v51, %v67
    %v84 = vadd.f32 %v52, %v68
    %v85 = vadd.f32 %v53, %v69
    %v86 = vadd.f32 %v54, %v70
    %v87 = vadd.f32 %v55, %v71
    %v88 = vadd.f32 %v56, %v72
    %89 = vst [vmem:[#allocation2] sm:$0xff] %v73
    %90 = vst [vmem:[#allocation2 + $0x8] sm:$0xff] %v74
    %91 = vst [vmem:[#allocation2 + $0x10] sm:$0xff] %v75
    %92 = vst [vmem:[#allocation2 + $0x18] sm:$0xff] %v76
    %93 = vst [vmem:[#allocation2 + $0x20] sm:$0xff] %v77
    %94 = vst [vmem:[#allocation2 + $0x28] sm:$0xff] %v78
    %95 = vst [vmem:[#allocation2 + $0x30] sm:$0xff] %v79
    %96 = vst [vmem:[#allocation2 + $0x38] sm:$0xff] %v80
    %97 = vst [vmem:[#allocation2 + $0x40] sm:$0xff] %v81
    %98 = vst [vmem:[#allocation2 + $0x48] sm:$0xff] %v82
    %99 = vst [vmem:[#allocation2 + $0x50] sm:$0xff] %v83
    %100 = vst [vmem:[#allocation2 + $0x58] sm:$0xff] %v84
    %101 = vst [vmem:[#allocation2 + $0x60] sm:$0xff] %v85
    %102 = vst [vmem:[#allocation2 + $0x68] sm:$0xff] %v86
    %103 = vst [vmem:[#allocation2 + $0x70] sm:$0xff] %v87
    %104 = vst [vmem:[#allocation2 + $0x78] sm:$0xff] %v88
    %v105 = vld [vmem:[#allocation2] sm:$0xff]
    %v106 = vld [vmem:[#allocation2 + $0x8] sm:$0xff]
    %v107 = vld [vmem:[#allocation2 + $0x10] sm:$0xff]
    %v108 = vld [vmem:[#allocation2 + $0x18] sm:$0xff]
    %v109 = vld [vmem:[#allocation2 + $0x20] sm:$0xff]
    %v110 = vld [vmem:[#allocation2 + $0x28] sm:$0xff]
    %v111 = vld [vmem:[#allocation2 + $0x30] sm:$0xff]
    %v112 = vld [vmem:[#allocation2 + $0x38] sm:$0xff]
    %v113 = vld [vmem:[#allocation2 + $0x40] sm:$0xff]
    %v114 = vld [vmem:[#allocation2 + $0x48] sm:$0xff]
    %v115 = vld [vmem:[#allocation2 + $0x50] sm:$0xff]
    %v116 = vld [vmem:[#allocation2 + $0x58] sm:$0xff]
    %v117 = vld [vmem:[#allocation2 + $0x60] sm:$0xff]
    %v118 = vld [vmem:[#allocation2 + $0x68] sm:$0xff]
    %v119 = vld [vmem:[#allocation2 + $0x70] sm:$0xff]
    %v120 = vld [vmem:[#allocation2 + $0x78] sm:$0xff]
    %v121 = vld [vmem:[%s0 + $0x8] sm:$0xff]
    %v122 = vld [vmem:[%s0 + $0x18] sm:$0xff]
    %v123 = vld [vmem:[%s0 + $0x28] sm:$0xff]
    %v124 = vld [vmem:[%s0 + $0x38] sm:$0xff]
    %v125 = vld [vmem:[%s0 + $0x48] sm:$0xff]
    %v126 = vld [vmem:[%s0 + $0x58] sm:$0xff]
    %v127 = vld [vmem:[%s0 + $0x68] sm:$0xff]
    %v128 = vld [vmem:[%s0 + $0x78] sm:$0xff]
    %v129 = vld [vmem:[%s0 + $0x88] sm:$0xff]
    %v130 = vld [vmem:[%s0 + $0x98] sm:$0xff]
    %v131 = vld [vmem:[%s0 + $0xa8] sm:$0xff]
    %v132 = vld [vmem:[%s0 + $0xb8] sm:$0xff]
    %v133 = vld [vmem:[%s0 + $0xc8] sm:$0xff]
    %v134 = vld [vmem:[%s0 + $0xd8] sm:$0xff]
    %v135 = vld [vmem:[%s0 + $0xe8] sm:$0xff]
    %v136 = vld [vmem:[%s0 + $0xf8] sm:$0xff]
    %v137 = vadd.f32 %v105, %v121
    %v138 = vadd.f32 %v106, %v122
    %v139 = vadd.f32 %v107, %v123
    %v140 = vadd.f32 %v108, %v124
    %v141 = vadd.f32 %v109, %v125
    %v142 = vadd.f32 %v110, %v126
    %v143 = vadd.f32 %v111, %v127
    %v144 = vadd.f32 %v112, %v128
    %v145 = vadd.f32 %v113, %v129
    %v146 = vadd.f32 %v114, %v130
    %v147 = vadd.f32 %v115, %v131
    %v148 = vadd.f32 %v116, %v132
    %v149 = vadd.f32 %v117, %v133
    %v150 = vadd.f32 %v118, %v134
    %v151 = vadd.f32 %v119, %v135
    %v152 = vadd.f32 %v120, %v136
    %153 = vst [vmem:[#allocation2] sm:$0xff] %v137
    %154 = vst [vmem:[#allocation2 + $0x8] sm:$0xff] %v138
    %155 = vst [vmem:[#allocation2 + $0x10] sm:$0xff] %v139
    %156 = vst [vmem:[#allocation2 + $0x18] sm:$0xff] %v140
    %157 = vst [vmem:[#allocation2 + $0x20] sm:$0xff] %v141
    %158 = vst [vmem:[#allocation2 + $0x28] sm:$0xff] %v142
    %159 = vst [vmem:[#allocation2 + $0x30] sm:$0xff] %v143
    %160 = vst [vmem:[#allocation2 + $0x38] sm:$0xff] %v144
    %161 = vst [vmem:[#allocation2 + $0x40] sm:$0xff] %v145
    %162 = vst [vmem:[#allocation2 + $0x48] sm:$0xff] %v146
    %163 = vst [vmem:[#allocation2 + $0x50] sm:$0xff] %v147
    %164 = vst [vmem:[#allocation2 + $0x58] sm:$0xff] %v148
    %165 = vst [vmem:[#allocation2 + $0x60] sm:$0xff] %v149
    %166 = vst [vmem:[#allocation2 + $0x68] sm:$0xff] %v150
    %167 = vst [vmem:[#allocation2 + $0x70] sm:$0xff] %v151
    %168 = vst [vmem:[#allocation2 + $0x78] sm:$0xff] %v152
    // Predicated region
    $region26: #{cam_forward.1} parent=1 // pred_check
      %p169 = pneg %p21
    $region27: #{cam_forward.1} parent=1 // pred_check_branch
      %171 = sbr.rel (%p169) target = $region29
    $region28: #{cam_forward.1} parent=1 // pred_region
      %v172 = vld [vmem:[#allocation2] sm:$0xff]
      %v173 = vld [vmem:[#allocation2 + $0x8] sm:$0xff]
      %v174 = vld [vmem:[#allocation2 + $0x10] sm:$0xff]
      %v175 = vld [vmem:[#allocation2 + $0x18] sm:$0xff]
      %v176 = vld [vmem:[#allocation2 + $0x20] sm:$0xff]
      %v177 = vld [vmem:[#allocation2 + $0x28] sm:$0xff]
      %v178 = vld [vmem:[#allocation2 + $0x30] sm:$0xff]
      %v179 = vld [vmem:[#allocation2 + $0x38] sm:$0xff]
      %v180 = vld [vmem:[#allocation2 + $0x40] sm:$0xff]
      %v181 = vld [vmem:[#allocation2 + $0x48] sm:$0xff]
      %v182 = vld [vmem:[#allocation2 + $0x50] sm:$0xff]
      %v183 = vld [vmem:[#allocation2 + $0x58] sm:$0xff]
      %v184 = vld [vmem:[#allocation2 + $0x60] sm:$0xff]
      %v185 = vld [vmem:[#allocation2 + $0x68] sm:$0xff]
      %v186 = vld [vmem:[#allocation2 + $0x70] sm:$0xff]
      %v187 = vld [vmem:[#allocation2 + $0x78] sm:$0xff]
      %188 = vadd.xlane.f32.xlu0 %v172
      %v189 = vpop.xlane.xlu0 %188
      %190 = vadd.xlane.f32.xlu0 %v173
      %v191 = vpop.xlane.xlu0 %190
      %192 = vadd.xlane.f32.xlu0 %v174
      %v193 = vpop.xlane.xlu0 %192
      %194 = vadd.xlane.f32.xlu0 %v175
      %v195 = vpop.xlane.xlu0 %194
      %196 = vadd.xlane.f32.xlu0 %v176
      %v197 = vpop.xlane.xlu0 %196
      %198 = vadd.xlane.f32.xlu0 %v177
      %v199 = vpop.xlane.xlu0 %198
      %200 = vadd.xlane.f32.xlu0 %v178
      %v201 = vpop.xlane.xlu0 %200
      %202 = vadd.xlane.f32.xlu0 %v179
      %v203 = vpop.xlane.xlu0 %202
      %204 = vadd.xlane.f32.xlu0 %v180
      %v205 = vpop.xlane.xlu0 %204
      %206 = vadd.xlane.f32.xlu0 %v181
      %v207 = vpop.xlane.xlu0 %206
      %208 = vadd.xlane.f32.xlu0 %v182
      %v209 = vpop.xlane.xlu0 %208
      %210 = vadd.xlane.f32.xlu0 %v183
      %v211 = vpop.xlane.xlu0 %210
      %212 = vadd.xlane.f32.xlu0 %v184
      %v213 = vpop.xlane.xlu0 %212
      %214 = vadd.xlane.f32.xlu0 %v185
      %v215 = vpop.xlane.xlu0 %214
      %216 = vadd.xlane.f32.xlu0 %v186
      %v217 = vpop.xlane.xlu0 %216
      %218 = vadd.xlane.f32.xlu0 %v187
      %v219 = vpop.xlane.xlu0 %218
      %v220 = vmul.f32 %v189, 0.00390625
      %v221 = vmul.f32 %v191, 0.00390625
      %v222 = vmul.f32 %v193, 0.00390625
      %v223 = vmul.f32 %v195, 0.00390625
      %v224 = vmul.f32 %v197, 0.00390625
      %v225 = vmul.f32 %v199, 0.00390625
      %v226 = vmul.f32 %v201, 0.00390625
      %v227 = vmul.f32 %v203, 0.00390625
      %v228 = vmul.f32 %v205, 0.00390625
      %v229 = vmul.f32 %v207, 0.00390625
      %v230 = vmul.f32 %v209, 0.00390625
      %v231 = vmul.f32 %v211, 0.00390625
      %v232 = vmul.f32 %v213, 0.00390625
      %v233 = vmul.f32 %v215, 0.00390625
      %v234 = vmul.f32 %v217, 0.00390625
      %v235 = vmul.f32 %v219, 0.00390625
      %v236 = vld [vmem:[%s1] sm:$0xff]
      %v237 = vld [vmem:[%s1 + $0x8] sm:$0xff]
      %v238 = vld [vmem:[%s1 + $0x10] sm:$0xff]
      %v239 = vld [vmem:[%s1 + $0x18] sm:$0xff]
      %v240 = vld [vmem:[%s1 + $0x20] sm:$0xff]
      %v241 = vld [vmem:[%s1 + $0x28] sm:$0xff]
      %v242 = vld [vmem:[%s1 + $0x30] sm:$0xff]
      %v243 = vld [vmem:[%s1 + $0x38] sm:$0xff]
      %v244 = vld [vmem:[%s2] sm:$0x1]
      %v246 = vlaneseq
      %v247 = vshrl.u32 %v246, 7
      %v248 = vsub.s32 0, %v247
      %v249 = vrot.slane %v244, %v248
      %v267 = vlaneseq
      %v268 = vand.u32 %v267, 127
      %v269 = vlaneseq
      %v270 = vshrl.u32 %v269, 7
      %v271 = vsub.s32 %v268, %v270
      %v272 = vrot.slane %v220, %v271
      %v273 = vadd.s32 %v268, 4294967288
      %v274 = vlaneseq
      %v275 = vshrl.u32 %v274, 7
      %v276 = vsub.s32 %v273, %v275
      %v277 = vrot.slane %v221, %v276
      %vm278 = vcmask 130112
      %v279 = vsel %vm278, %v277, %v272
      %v280 = vadd.s32 %v268, 4294967280
      %v281 = vlaneseq
      %v282 = vshrl.u32 %v281, 7
      %v283 = vsub.s32 %v280, %v282
      %v284 = vrot.slane %v222, %v283
      %vm285 = vcmask 195712
      %v286 = vsel %vm285, %v284, %v279
      %v287 = vadd.s32 %v268, 4294967272
      %v288 = vlaneseq
      %v289 = vshrl.u32 %v288, 7
      %v290 = vsub.s32 %v287, %v289
      %v291 = vrot.slane %v223, %v290
      %vm292 = vcmask 261312
      %v293 = vsel %vm292, %v291, %v286
      %v294 = vadd.s32 %v268, 4294967264
      %v295 = vlaneseq
      %v296 = vshrl.u32 %v295, 7
      %v297 = vsub.s32 %v294, %v296
      %v298 = vrot.slane %v224, %v297
      %vm299 = vcmask 326912
      %v300 = vsel %vm299, %v298, %v293
      %v301 = vadd.s32 %v268, 4294967256
      %v302 = vlaneseq
      %v303 = vshrl.u32 %v302, 7
      %v304 = vsub.s32 %v301, %v303
      %v305 = vrot.slane %v225, %v304
      %vm306 = vcmask 392512
      %v307 = vsel %vm306, %v305, %v300
      %v308 = vadd.s32 %v268, 4294967248
      %v309 = vlaneseq
      %v310 = vshrl.u32 %v309, 7
      %v311 = vsub.s32 %v308, %v310
      %v312 = vrot.slane %v226, %v311
      %vm313 = vcmask 458112
      %v314 = vsel %vm313, %v312, %v307
      %v315 = vadd.s32 %v268, 4294967240
      %v316 = vlaneseq
      %v317 = vshrl.u32 %v316, 7
      %v318 = vsub.s32 %v315, %v317
      %v319 = vrot.slane %v227, %v318
      %vm320 = vcmask 523712
      %v321 = vsel %vm320, %v319, %v314
      %v322 = vlaneseq
      %v323 = vshrl.u32 %v322, 7
      %v324 = vsub.s32 %v268, %v323
      %v325 = vrot.slane %v228, %v324
      %v326 = vlaneseq
      %v327 = vshrl.u32 %v326, 7
      %v328 = vsub.s32 %v273, %v327
      %v329 = vrot.slane %v229, %v328
      %v330 = vsel %vm278, %v329, %v325
      %v331 = vlaneseq
      %v332 = vshrl.u32 %v331, 7
      %v333 = vsub.s32 %v280, %v332
      %v334 = vrot.slane %v230, %v333
      %v335 = vsel %vm285, %v334, %v330
      %v336 = vlaneseq
      %v337 = vshrl.u32 %v336, 7
      %v338 = vsub.s32 %v287, %v337
      %v339 = vrot.slane %v231, %v338
      %v340 = vsel %vm292, %v339, %v335
      %v341 = vlaneseq
      %v342 = vshrl.u32 %v341, 7
      %v343 = vsub.s32 %v294, %v342
      %v344 = vrot.slane %v232, %v343
      %v345 = vsel %vm299, %v344, %v340
      %v346 = vlaneseq
      %v347 = vshrl.u32 %v346, 7
      %v348 = vsub.s32 %v301, %v347
      %v349 = vrot.slane %v233, %v348
      %v350 = vsel %vm306, %v349, %v345
      %v351 = vlaneseq
      %v352 = vshrl.u32 %v351, 7
      %v353 = vsub.s32 %v308, %v352
      %v354 = vrot.slane %v234, %v353
      %v355 = vsel %vm313, %v354, %v350
      %v356 = vlaneseq
      %v357 = vshrl.u32 %v356, 7
      %v358 = vsub.s32 %v315, %v357
      %v359 = vrot.slane %v235, %v358
      %v360 = vsel %vm320, %v359, %v355
      %vm361 = vcmask 1041409
      %v362 = vsel %vm361, %v360, %v321
      %vm363 = vcmask 523264
      %v364 = vsel %vm363, %v362, 0
      %366 = vmatprep.subr.mxu0 0.0
      %367 = vmatpush1.msra.mxu0 %v236
      %368 = vmatprep.subr.mxu0 0.0
      %369 = vmatpush1.msra.mxu0 %v237
      %370 = vmatprep.subr.mxu0 0.0
      %371 = vmatpush1.msra.mxu0 %v238
      %372 = vmatprep.subr.mxu0 0.0
      %373 = vmatpush1.msra.mxu0 %v239
      %374 = vmatprep.subr.mxu0 0.0
      %375 = vmatpush1.msra.mxu0 %v240
      %376 = vmatprep.subr.mxu0 0.0
      %377 = vmatpush1.msra.mxu0 %v241
      %378 = vmatprep.subr.mxu0 0.0
      %379 = vmatpush1.msra.mxu0 %v242
      %380 = vmatprep.subr.mxu0 0.0
      %381 = vmatpush1.msra.mxu0 %v243
      %382 = vmatprep.subr.mxu0 0.0
      %383 = vmatpush1.msra.mxu0 0.0
      %384 = vmatprep.subr.mxu0 0.0
      %385 = vmatpush1.msra.mxu0 0.0
      %386 = vmatprep.subr.mxu0 0.0
      %387 = vmatpush1.msra.mxu0 0.0
      %388 = vmatprep.subr.mxu0 0.0
      %389 = vmatpush1.msra.mxu0 0.0
      %390 = vmatprep.subr.mxu0 0.0
      %391 = vmatpush1.msra.mxu0 0.0
      %392 = vmatprep.subr.mxu0 0.0
      %393 = vmatpush1.msra.mxu0 0.0
      %394 = vmatprep.subr.mxu0 0.0
      %395 = vmatpush1.msra.mxu0 0.0
      %396 = vmatprep.subr.mxu0 0.0
      %397 = vmatpush1.msra.mxu0 0.0
      %398 = vmatprep.subr.mxu0 0.0
      %399 = vmatpush1.msra.mxu0 0.0
      %400 = vmatprep.subr.mxu0 0.0
      %401 = vmatpush1.msra.mxu0 0.0
      %402 = vmatprep.subr.mxu0 0.0
      %403 = vmatpush1.msra.mxu0 0.0
      %404 = vmatprep.subr.mxu0 0.0
      %405 = vmatpush1.msra.mxu0 0.0
      %406 = vmatprep.subr.mxu0 0.0
      %407 = vmatpush1.msra.mxu0 0.0
      %408 = vmatprep.subr.mxu0 0.0
      %409 = vmatpush1.msra.mxu0 0.0
      %410 = vmatprep.subr.mxu0 0.0
      %411 = vmatpush1.msra.mxu0 0.0
      %412 = vmatprep.subr.mxu0 0.0
      %413 = vmatpush1.msra.mxu0 0.0
      %414 = vmatprep.subr.mxu0 0.0
      %415 = vmatpush1.msra.mxu0 0.0
      %416 = vmatprep.subr.mxu0 0.0
      %417 = vmatpush1.msra.mxu0 0.0
      %418 = vmatprep.subr.mxu0 0.0
      %419 = vmatpush1.msra.mxu0 0.0
      %420 = vmatprep.subr.mxu0 0.0
      %421 = vmatpush1.msra.mxu0 0.0
      %422 = vmatprep.subr.mxu0 0.0
      %423 = vmatpush1.msra.mxu0 0.0
      %424 = vmatprep.subr.mxu0 0.0
      %425 = vmatpush1.msra.mxu0 0.0
      %426 = vmatprep.subr.mxu0 0.0
      %427 = vmatpush1.msra.mxu0 0.0
      %428 = vmatprep.subr.mxu0 0.0
      %429 = vmatpush1.msra.mxu0 0.0
      %430 = vmatprep.mubr.f32.mxu0 0.0
      %431 = vmatmul.mubr.f32.gmra.mrb[0].mxu0 %v364
      %v432 = vpop.f32.mrb[0].mxu0
      %v433 = vadd.f32 %v249, %v432
      %v434 = vpop.f32.mrb[0].mxu0
      %435 = vdwg.mxu0
      %v436 = vmax.f32 %v433, 0.0
      %v437 = vld [vmem:[%s3] sm:$0xff]
      %v438 = vld [vmem:[%s3 + $0x8] sm:$0xff]
      %v439 = vld [vmem:[%s4] sm:$0x1]
      %v441 = vlaneseq
      %v442 = vshrl.u32 %v441, 7
      %v443 = vsub.s32 0, %v442
      %v444 = vrot.slane %v439, %v443
      %vm446 = vcmask 130048
      %v448 = vsel %vm446, %v436, 0
      %450 = vmatprep.subr.mxu0 0.0
      %451 = vmatpush1.msra.mxu0 %v437
      %452 = vmatprep.subr.mxu0 0.0
      %453 = vmatpush1.msra.mxu0 %v438
      %454 = vmatprep.subr.mxu0 0.0
      %455 = vmatpush1.msra.mxu0 0.0
      %456 = vmatprep.subr.mxu0 0.0
      %457 = vmatpush1.msra.mxu0 0.0
      %458 = vmatprep.subr.mxu0 0.0
      %459 = vmatpush1.msra.mxu0 0.0
      %460 = vmatprep.subr.mxu0 0.0
      %461 = vmatpush1.msra.mxu0 0.0
      %462 = vmatprep.subr.mxu0 0.0
      %463 = vmatpush1.msra.mxu0 0.0
      %464 = vmatprep.subr.mxu0 0.0
      %465 = vmatpush1.msra.mxu0 0.0
      %466 = vmatprep.subr.mxu0 0.0
      %467 = vmatpush1.msra.mxu0 0.0
      %468 = vmatprep.subr.mxu0 0.0
      %469 = vmatpush1.msra.mxu0 0.0
      %470 = vmatprep.subr.mxu0 0.0
      %471 = vmatpush1.msra.mxu0 0.0
      %472 = vmatprep.subr.mxu0 0.0
      %473 = vmatpush1.msra.mxu0 0.0
      %474 = vmatprep.subr.mxu0 0.0
      %475 = vmatpush1.msra.mxu0 0.0
      %476 = vmatprep.subr.mxu0 0.0
      %477 = vmatpush1.msra.mxu0 0.0
      %478 = vmatprep.subr.mxu0 0.0
      %479 = vmatpush1.msra.mxu0 0.0
      %480 = vmatprep.subr.mxu0 0.0
      %481 = vmatpush1.msra.mxu0 0.0
      %482 = vmatprep.subr.mxu0 0.0
      %483 = vmatpush1.msra.mxu0 0.0
      %484 = vmatprep.subr.mxu0 0.0
      %485 = vmatpush1.msra.mxu0 0.0
      %486 = vmatprep.subr.mxu0 0.0
      %487 = vmatpush1.msra.mxu0 0.0
      %488 = vmatprep.subr.mxu0 0.0
      %489 = vmatpush1.msra.mxu0 0.0
      %490 = vmatprep.subr.mxu0 0.0
      %491 = vmatpush1.msra.mxu0 0.0
      %492 = vmatprep.subr.mxu0 0.0
      %493 = vmatpush1.msra.mxu0 0.0
      %494 = vmatprep.subr.mxu0 0.0
      %495 = vmatpush1.msra.mxu0 0.0
      %496 = vmatprep.subr.mxu0 0.0
      %497 = vmatpush1.msra.mxu0 0.0
      %498 = vmatprep.subr.mxu0 0.0
      %499 = vmatpush1.msra.mxu0 0.0
      %500 = vmatprep.subr.mxu0 0.0
      %501 = vmatpush1.msra.mxu0 0.0
      %502 = vmatprep.subr.mxu0 0.0
      %503 = vmatpush1.msra.mxu0 0.0
      %504 = vmatprep.subr.mxu0 0.0
      %505 = vmatpush1.msra.mxu0 0.0
      %506 = vmatprep.subr.mxu0 0.0
      %507 = vmatpush1.msra.mxu0 0.0
      %508 = vmatprep.subr.mxu0 0.0
      %509 = vmatpush1.msra.mxu0 0.0
      %510 = vmatprep.subr.mxu0 0.0
      %511 = vmatpush1.msra.mxu0 0.0
      %512 = vmatprep.subr.mxu0 0.0
      %513 = vmatpush1.msra.mxu0 0.0
      %514 = vmatprep.mubr.f32.mxu0 0.0
      %515 = vmatmul.mubr.f32.gmra.mrb[0].mxu0 %v448
      %v516 = vpop.f32.mrb[0].mxu0
      %v517 = vadd.f32 %v444, %v516
      %v518 = vpop.f32.mrb[0].mxu0
      %519 = vdwg.mxu0
      %vm520 = vcmask 517120
      %v521 = vsel %vm520, %v517, -inf
      %522 = vmax.xlane.f32.xlu0 %v521
      %v523 = vpop.xlane.xlu0 %522
      %v524 = vsub.f32 %v517, %v523
      %v525 = vmul.f32 %v524, 1.442695
      %v526 = vpow.pop %v525
      %v527 = vsel %vm520, %v526, 0.0
      %528 = vadd.xlane.f32.xlu0 %v527
      %v529 = vpop.xlane.xlu0 %528
      %v530 = vrcp.pop %v529
      %v531 = vmul.f32 %v526, %v530
      %v532 = vsel %vm520, %v531, inf
      %533 = vmin.xlane.f32.xlu0 %v532
      %v534 = vpop.xlane.xlu0 %533
      %vm535 = vcmask 1041408
      %v536 = vsel %vm535, %v534, inf
      %v537 = vrot.slane %v536, 4
      %v538 = vmin.f32 %v536, %v537
      %v539 = vrot.slane %v538, 2
      %v540 = vmin.f32 %v538, %v539
      %v541 = vrot.slane %v540, 1
      %v542 = vmin.f32 %v540, %v541
      %v543 = vsub.f32 %v531, %v542
      %v544 = vsel %vm520, %v543, -inf
      %545 = vmax.xlane.f32.xlu0 %v544
      %v546 = vpop.xlane.xlu0 %545
      %v547 = vsel %vm535, %v546, -inf
      %v548 = vrot.slane %v547, 4
      %v549 = vmax.f32 %v547, %v548
      %v550 = vrot.slane %v549, 2
      %v551 = vmax.f32 %v549, %v550
      %v552 = vrot.slane %v551, 1
      %v553 = vmax.f32 %v551, %v552
      %v554 = vrcp.pop %v553
      %v555 = vmul.f32 %v543, %v554
      %556 = vst.msk [vmem:[#allocation3] sm:$0x3] %vm520, %v555
    $region29: #{cam_forward.1} parent=1 // pred_fallthru
      _
    // Predicated region
    $region30: #{cam_forward.1} parent=1 // pred_check
      _
    $region31: #{cam_forward.1} parent=1 // pred_check_branch
      %558 = sbr.rel (0) target = $region33
    $region32: #{cam_forward.1} parent=1 // pred_region
      %s560 = ssub.s32 32, 32
      %561 = vsyncadd [#allocation4], %s560
      %s563 = sshll.u32 [#allocation3], 4
      %s564 = int_to_ptr.vmem [resolvable:$true] %s563
      %566 = dma.vmem_to_hbm [thread:$0]  %s564, 32, %s5, [#allocation4]
    $region33: #{cam_forward.1} parent=1 // pred_fallthru
      _
    // Predicated region
    $region34: #{cam_forward.1} parent=1 // pred_check
      _
    $region35: #{cam_forward.1} parent=1 // pred_check_branch
      %568 = sbr.rel (0) target = $region37
    $region36: #{cam_forward.1} parent=1 // pred_region
      %569 = dma.done [#allocation4], 32
    $region37: #{cam_forward.1} parent=1 // pred_fallthru
      _
    %570 = vsyncpa [#allocation4], 1

</llo_original>
